<compile_context>
chip_gen: v7x
topology: tpu7x:2x2x1
jax: 0.10.0
libtpu: 0.0.40
codegen_flags: <defaults>
</compile_context>

<pallas_src>
import numpy as np
import jax
import jax.numpy as jnp
from jax.experimental import pallas as pl
from jax.experimental.pallas import tpu as pltpu

KERNEL_SIZE = 25  # moving-average window from the PyTorch module


# ----------------------------- kernel body ---------------------------------

def make_dlstm_kernel(B, L, C, H):
    """B here is the (sublane-padded) kernel batch."""
    H2 = 2 * H

    def kernel(x_ref, gw_ref, fw_ref, out_ref):
        # x_ref : [C*B, L]   rows ordered (channel-major, batch-minor)
        # gw_ref: [L+2H+1, 8H] = [wih ; whh ; bias]   (decomposition folded in)
        # fw_ref: [C*2H+1, NC] = [fcw2 ; fcb]         (row-duplicated FC chunks)
        wih = gw_ref[0:L, :]                    # [L, 8H]
        whh = gw_ref[L:L + H2, :]               # [2H, 8H] block-diagonal
        b = gw_ref[L + H2:L + H2 + 1, :]        # [1, 8H]
        fcw2 = fw_ref[0:C * H2, :]              # [C*2H, NC]
        fcb = fw_ref[C * H2:C * H2 + 1, :]      # [1, NC]

        # ONE hoisted input-to-hidden matmul for all C channel-steps of BOTH LSTMs.
        xg_all = jnp.dot(x_ref[...], wih,
                         preferred_element_type=jnp.float32) + b   # [C*B, 8H]

        h_cat = jnp.zeros((B, H2), jnp.float32)   # [hs | ht]
        c_cat = jnp.zeros((B, H2), jnp.float32)   # [cs | ct]
        hs = []
        for t in range(C):                        # static unroll (C small)
            # sublane-aligned row slice (B is a multiple of 8)
            gates = xg_all[t * B:(t + 1) * B, :] + jnp.dot(
                h_cat, whh, preferred_element_type=jnp.float32)    # [B, 8H]
            # gate order (i_s,i_t,f_s,f_t,o_s,o_t,g_s,g_t): sigmoid on first 6H,
            # tanh only on last 2H.
            sig = jax.nn.sigmoid(gates[:, :3 * H2])
            g_cat = jnp.tanh(gates[:, 3 * H2:])
            i_cat = sig[:, 0 * H2:1 * H2]
            f_cat = sig[:, 1 * H2:2 * H2]
            o_cat = sig[:, 2 * H2:3 * H2]
            c_cat = f_cat * c_cat + i_cat * g_cat
            h_cat = o_cat * jnp.tanh(c_cat)
            hs.append(h_cat)

        # Single FC dot after the recurrence: [hs|ht] @ [W_t;W_t] == (hs+ht) @ W_t.
        h_all = jnp.concatenate(hs, axis=1)                         # [B, C*2H]
        logits = jnp.dot(h_all, fcw2,
                         preferred_element_type=jnp.float32) + fcb  # [B, NC]

        m = jnp.max(logits, axis=1, keepdims=True)
        e = jnp.exp(logits - m)
        out_ref[...] = e / jnp.sum(e, axis=1, keepdims=True)

    return kernel


# ----------------------------- param fusion (wrapper-side) ------------------

def _build_avg_matrix(L, K):
    """A[i, j] such that trend = A @ x along time, with edge replication."""
    pad = (K - 1) // 2
    A = np.zeros((L, L), dtype=np.float32)
    for i in range(L):
        for k in range(K):
            j = min(max(i + k - pad, 0), L - 1)
            A[i, j] += 1.0 / K
    return jnp.asarray(A)


def _fuse_params(params):
    wih_s, whh_s, b_s, wih_t, whh_t, b_t, fcw, fcb = params
    L = wih_s.shape[0]
    H = whh_s.shape[0]
    NC = fcw.shape[1]
    C = fcw.shape[0] // H
    hi = jax.lax.Precision.HIGHEST

    # Fold the series decomposition into the input weights:
    #   seasonal_row @ W_ih_s == x_row @ (W_ih_s - A^T W_ih_s)
    #   trend_row    @ W_ih_t == x_row @ (A^T W_ih_t)
    A = _build_avg_matrix(L, KERNEL_SIZE)
    wih_s_eff = wih_s - jnp.dot(A.T, wih_s, precision=hi)   # [L, 4H]
    wih_t_eff = jnp.dot(A.T, wih_t, precision=hi)           # [L, 4H]

    def interleave(ws, wt):
        # Source gate column order is PyTorch's (i, f, g, o).
        # Fused order: (i_s,i_t, f_s,f_t, o_s,o_t, g_s,g_t) -> sigmoid gates are a
        # contiguous [:, :6H] block, tanh gate a contiguous [:, 6H:8H] block.
        order = (0, 1, 3, 2)   # i, f, o, g
        parts = []
        for k in order:
            parts.append(ws[:, k * H:(k + 1) * H])
            parts.append(wt[:, k * H:(k + 1) * H])
        return jnp.concatenate(parts, axis=1)

    wih_f = interleave(wih_s_eff, wih_t_eff)                 # [L, 8H]
    zH = jnp.zeros((H, 4 * H), jnp.float32)
    whh_f = interleave(jnp.concatenate([whh_s, zH], axis=0),
                       jnp.concatenate([zH, whh_t], axis=0))  # [2H, 8H]
    b_f = interleave(b_s, b_t)                                # [1, 8H]

    # Packed gate-weight array (one DMA): [wih ; whh ; bias].
    gw = jnp.concatenate([wih_f, whh_f, b_f], axis=0)         # [L+2H+1, 8H]

    # Row-duplicated FC chunks + bias (one DMA): [hs|ht] @ [W_t;W_t] = (hs+ht)@W_t.
    fcw_r = fcw.reshape(C, H, NC)
    fcw2 = jnp.concatenate([fcw_r, fcw_r], axis=1).reshape(C * 2 * H, NC)
    fw = jnp.concatenate([fcw2, fcb], axis=0)                 # [C*2H+1, NC]

    return gw, fw, (L, H, C, NC)


# ----------------------------- wrapper --------------------------------------

def dlstm_forward(x, params):
    B, L, C = x.shape
    gw, fw, (Lw, H, Cw, NC) = _fuse_params(params)
    assert Lw == L and Cw == C

    # Pad batch to a sublane multiple (8 f32 rows) so per-step row slices of the
    # hoisted input-gate matmul are sublane-aligned; padded rows are sliced off.
    B_pad = max(8, ((B + 7) // 8) * 8)
    # Wrapper-side transpose + channel-major reshape (no in-kernel XLU transpose):
    # x_cbl[t*B_pad + b, l] = x[b, l, t]
    xt = jnp.transpose(x, (2, 0, 1))                          # [C, B, L]
    xt = jnp.pad(xt, ((0, 0), (0, B_pad - B), (0, 0)))        # [C, B_pad, L]
    x_cbl = xt.reshape(C * B_pad, L)

    kernel = make_dlstm_kernel(B_pad, L, C, H)

    def full_spec(shape):
        nd = len(shape)
        return pl.BlockSpec(shape, lambda i, _nd=nd: (0,) * _nd)

    args = (x_cbl, gw, fw)
    out = pl.pallas_call(
        kernel,
        out_shape=jax.ShapeDtypeStruct((B_pad, NC), jnp.float32),
        grid_spec=pltpu.PrefetchScalarGridSpec(
            num_scalar_prefetch=0,
            grid=(1,),
            in_specs=[full_spec(a.shape) for a in args],
            out_specs=full_spec((B_pad, NC)),
        ),
        # Single grid point; at larger B, add a batch grid axis marked "parallel"
        # to shard across v7x's two TensorCores.  VMEM footprint here is ~30 KB.
        compiler_params=pltpu.CompilerParams(
            dimension_semantics=("arbitrary",)),
    )(*args)
    return out[:B]


# --------------------------- reference (pure JAX) ----------------------------

def reference_forward(x, params):
    (wih_s, whh_s, b_s, wih_t, whh_t, b_t, fcw, fcb) = params
    B, L, C = x.shape
    pad = (KERNEL_SIZE - 1) // 2
    front = jnp.repeat(x[:, 0:1, :], pad, axis=1)
    end = jnp.repeat(x[:, -1:, :], pad, axis=1)
    xp = jnp.concatenate([front, x, end], axis=1)
    trend = jnp.stack([xp[:, k:k + L, :] for k in range(KERNEL_SIZE)], 0).mean(0)
    seasonal = x - trend
    s_in = jnp.transpose(seasonal, (0, 2, 1))
    t_in = jnp.transpose(trend, (0, 2, 1))
    H = whh_s.shape[0]

    def run_lstm(inp, wih, whh, b):
        h = jnp.zeros((B, H)); c = jnp.zeros((B, H))
        outs = []
        for t in range(inp.shape[1]):
            gates = inp[:, t, :] @ wih + h @ whh + b
            i = jax.nn.sigmoid(gates[:, :H]); f = jax.nn.sigmoid(gates[:, H:2 * H])
            g = jnp.tanh(gates[:, 2 * H:3 * H]); o = jax.nn.sigmoid(gates[:, 3 * H:])
            c = f * c + i * g
            h = o * jnp.tanh(c)
            outs.append(h)
        return jnp.stack(outs, axis=1)

    s_out = run_lstm(s_in, wih_s, whh_s, b_s)
    t_out = run_lstm(t_in, wih_t, whh_t, b_t)
    combined = (s_out + t_out).reshape(B, -1)
    logits = combined @ fcw + fcb
    return jax.nn.softmax(logits, axis=1)


# ------------------------------- main ----------------------------------------

if __name__ == "__main__":
    # config: seq_len=16, pred_len=8, enc_in=dec_in=4, num_classes=5, batch=2
    B, L, C, H, NUM_CLASSES = 2, 16, 4, 8, 5

    key = jax.random.PRNGKey(0)
    keys = jax.random.split(key, 11)

    # x only is used by the forward; x_mark_enc / x_dec / x_mark_dec are ignored.
    x = jax.random.normal(keys[0], (B, L, C), jnp.float32)

    bound_lstm = 1.0 / jnp.sqrt(H)
    bound_fc = 1.0 / jnp.sqrt(C * H)

    def unif(k, shape, bound):
        return jax.random.uniform(k, shape, jnp.float32, -bound, bound)

    # LSTM weights stored pre-transposed: W_ih^T [L, 4H], W_hh^T [H, 4H];
    # biases are (b_ih + b_hh) combined, shape [1, 4H] (2-D for TPU layout).
    wih_s = unif(keys[1], (L, 4 * H), bound_lstm)
    whh_s = unif(keys[2], (H, 4 * H), bound_lstm)
    b_s = unif(keys[3], (1, 4 * H), bound_lstm) + unif(keys[4], (1, 4 * H), bound_lstm)
    wih_t = unif(keys[5], (L, 4 * H), bound_lstm)
    whh_t = unif(keys[6], (H, 4 * H), bound_lstm)
    b_t = unif(keys[7], (1, 4 * H), bound_lstm) + unif(keys[8], (1, 4 * H), bound_lstm)
    # fc1: Linear(dec_in * pred_len, num_classes), stored transposed [C*H, num_classes]
    fcw = unif(keys[9], (C * H, NUM_CLASSES), bound_fc)
    fcb = unif(keys[10], (1, NUM_CLASSES), bound_fc)

    # NOTE: the PyTorch module's `self.LSTM_*.weight = Parameter(...)` lines only
    # attach unused extra parameters; they do not affect the forward pass.
    params = (wih_s, whh_s, b_s, wih_t, whh_t, b_t, fcw, fcb)

    out = dlstm_forward(x, params)
    out = jax.block_until_ready(out)

    ref = reference_forward(x, params)
    assert out.shape == (B, NUM_CLASSES)
    assert jnp.allclose(out, ref, atol=1e-4, rtol=1e-4), (out, ref)
    assert jnp.allclose(jnp.sum(out, axis=1), 1.0, atol=1e-4)

    print("KERNEL_OK")
</pallas_src>

<mosaic_0001>
module attributes {stable_mosaic.version = 11 : i64} {
  func.func @kernel(%arg0: i32, %arg1: memref<32x16xf32, #tpu.memory_space<vmem>>, %arg2: memref<33x64xf32, #tpu.memory_space<vmem>>, %arg3: memref<65x5xf32, #tpu.memory_space<vmem>>, %arg4: memref<8x5xf32, #tpu.memory_space<vmem>>) attributes {dimension_semantics = [#tpu.dimension_semantics<arbitrary>], iteration_bounds = array<i64: 1>, scalar_prefetch = 0 : i64, scratch_operands = 0 : i64, tpu.core_type = #tpu.core_type<tc>, window_params = [{pipeline_mode = #tpu.pipeline_mode<synchronous>, transform_indices = @transform_0, window_bounds = array<i64: 32, 16>}, {pipeline_mode = #tpu.pipeline_mode<synchronous>, transform_indices = @transform_1, window_bounds = array<i64: 33, 64>}, {pipeline_mode = #tpu.pipeline_mode<synchronous>, transform_indices = @transform_2, window_bounds = array<i64: 65, 5>}, {pipeline_mode = #tpu.pipeline_mode<synchronous>, transform_indices = @transform_3, window_bounds = array<i64: 8, 5>}]} {
    %c0 = arith.constant 0 : index
    %c0_0 = arith.constant 0 : index
    %0 = vector.load %arg2[%c0, %c0_0] : memref<33x64xf32, #tpu.memory_space<vmem>>, vector<16x64xf32>
    %c16 = arith.constant 16 : index
    %c0_1 = arith.constant 0 : index
    %1 = vector.load %arg2[%c16, %c0_1] : memref<33x64xf32, #tpu.memory_space<vmem>>, vector<16x64xf32>
    %c32 = arith.constant 32 : index
    %c0_2 = arith.constant 0 : index
    %2 = vector.load %arg2[%c32, %c0_2] : memref<33x64xf32, #tpu.memory_space<vmem>>, vector<1x64xf32>
    %c0_3 = arith.constant 0 : index
    %c0_4 = arith.constant 0 : index
    %3 = vector.load %arg3[%c0_3, %c0_4] : memref<65x5xf32, #tpu.memory_space<vmem>>, vector<64x5xf32>
    %c64 = arith.constant 64 : index
    %c0_5 = arith.constant 0 : index
    %4 = vector.load %arg3[%c64, %c0_5] : memref<65x5xf32, #tpu.memory_space<vmem>>, vector<1x5xf32>
    %c0_6 = arith.constant 0 : index
    %c0_7 = arith.constant 0 : index
    %5 = vector.load %arg1[%c0_6, %c0_7] : memref<32x16xf32, #tpu.memory_space<vmem>>, vector<32x16xf32>
    %cst = arith.constant dense<0.000000e+00> : vector<32x64xf32>
    %6 = tpu.matmul %5, %0, %cst {dimension_numbers = #tpu.dot_dimension_numbers<[1], [0], [0], [1], [0, 0, 1, 1], [], []>} : vector<32x16xf32>, vector<16x64xf32>, vector<32x64xf32> -> vector<32x64xf32>
    %7 = vector.broadcast %2 : vector<1x64xf32> to vector<32x64xf32>
    %8 = arith.addf %6, %7 : vector<32x64xf32>
    %cst_8 = arith.constant 0.000000e+00 : f32
    %9 = vector.broadcast %cst_8 : f32 to vector<8x16xf32>
    %cst_9 = arith.constant 0.000000e+00 : f32
    %10 = vector.broadcast %cst_9 : f32 to vector<8x16xf32>
    %11 = vector.extract_strided_slice %8 {offsets = [0, 0], sizes = [8, 64], strides = [1, 1]} : vector<32x64xf32> to vector<8x64xf32>
    %cst_10 = arith.constant dense<0.000000e+00> : vector<8x64xf32>
    %12 = tpu.matmul %9, %1, %cst_10 {dimension_numbers = #tpu.dot_dimension_numbers<[1], [0], [0], [1], [0, 0, 1, 1], [], []>} : vector<8x16xf32>, vector<16x64xf32>, vector<8x64xf32> -> vector<8x64xf32>
    %13 = arith.addf %11, %12 : vector<8x64xf32>
    %14 = vector.extract_strided_slice %13 {offsets = [0, 0], sizes = [8, 48], strides = [1, 1]} : vector<8x64xf32> to vector<8x48xf32>
    %15 = arith.negf %14 : vector<8x48xf32>
    %16 = math.exp %15 : vector<8x48xf32>
    %cst_11 = arith.constant 1.000000e+00 : f32
    %17 = vector.broadcast %cst_11 : f32 to vector<8x48xf32>
    %18 = arith.addf %17, %16 : vector<8x48xf32>
    %19 = arith.divf %17, %18 : vector<8x48xf32>
    %20 = vector.extract_strided_slice %13 {offsets = [0, 48], sizes = [8, 16], strides = [1, 1]} : vector<8x64xf32> to vector<8x16xf32>
    %21 = math.tanh %20 : vector<8x16xf32>
    %22 = vector.extract_strided_slice %19 {offsets = [0, 0], sizes = [8, 16], strides = [1, 1]} : vector<8x48xf32> to vector<8x16xf32>
    %23 = vector.extract_strided_slice %19 {offsets = [0, 16], sizes = [8, 16], strides = [1, 1]} : vector<8x48xf32> to vector<8x16xf32>
    %24 = vector.extract_strided_slice %19 {offsets = [0, 32], sizes = [8, 16], strides = [1, 1]} : vector<8x48xf32> to vector<8x16xf32>
    %25 = arith.mulf %23, %10 : vector<8x16xf32>
    %26 = arith.mulf %22, %21 : vector<8x16xf32>
    %27 = arith.addf %25, %26 : vector<8x16xf32>
    %28 = math.tanh %27 : vector<8x16xf32>
    %29 = arith.mulf %24, %28 : vector<8x16xf32>
    %30 = vector.extract_strided_slice %8 {offsets = [8, 0], sizes = [8, 64], strides = [1, 1]} : vector<32x64xf32> to vector<8x64xf32>
    %cst_12 = arith.constant dense<0.000000e+00> : vector<8x64xf32>
    %31 = tpu.matmul %29, %1, %cst_12 {dimension_numbers = #tpu.dot_dimension_numbers<[1], [0], [0], [1], [0, 0, 1, 1], [], []>} : vector<8x16xf32>, vector<16x64xf32>, vector<8x64xf32> -> vector<8x64xf32>
    %32 = arith.addf %30, %31 : vector<8x64xf32>
    %33 = vector.extract_strided_slice %32 {offsets = [0, 0], sizes = [8, 48], strides = [1, 1]} : vector<8x64xf32> to vector<8x48xf32>
    %34 = arith.negf %33 : vector<8x48xf32>
    %35 = math.exp %34 : vector<8x48xf32>
    %cst_13 = arith.constant 1.000000e+00 : f32
    %36 = vector.broadcast %cst_13 : f32 to vector<8x48xf32>
    %37 = arith.addf %36, %35 : vector<8x48xf32>
    %38 = arith.divf %36, %37 : vector<8x48xf32>
    %39 = vector.extract_strided_slice %32 {offsets = [0, 48], sizes = [8, 16], strides = [1, 1]} : vector<8x64xf32> to vector<8x16xf32>
    %40 = math.tanh %39 : vector<8x16xf32>
    %41 = vector.extract_strided_slice %38 {offsets = [0, 0], sizes = [8, 16], strides = [1, 1]} : vector<8x48xf32> to vector<8x16xf32>
    %42 = vector.extract_strided_slice %38 {offsets = [0, 16], sizes = [8, 16], strides = [1, 1]} : vector<8x48xf32> to vector<8x16xf32>
    %43 = vector.extract_strided_slice %38 {offsets = [0, 32], sizes = [8, 16], strides = [1, 1]} : vector<8x48xf32> to vector<8x16xf32>
    %44 = arith.mulf %42, %27 : vector<8x16xf32>
    %45 = arith.mulf %41, %40 : vector<8x16xf32>
    %46 = arith.addf %44, %45 : vector<8x16xf32>
    %47 = math.tanh %46 : vector<8x16xf32>
    %48 = arith.mulf %43, %47 : vector<8x16xf32>
    %49 = vector.extract_strided_slice %8 {offsets = [16, 0], sizes = [8, 64], strides = [1, 1]} : vector<32x64xf32> to vector<8x64xf32>
    %cst_14 = arith.constant dense<0.000000e+00> : vector<8x64xf32>
    %50 = tpu.matmul %48, %1, %cst_14 {dimension_numbers = #tpu.dot_dimension_numbers<[1], [0], [0], [1], [0, 0, 1, 1], [], []>} : vector<8x16xf32>, vector<16x64xf32>, vector<8x64xf32> -> vector<8x64xf32>
    %51 = arith.addf %49, %50 : vector<8x64xf32>
    %52 = vector.extract_strided_slice %51 {offsets = [0, 0], sizes = [8, 48], strides = [1, 1]} : vector<8x64xf32> to vector<8x48xf32>
    %53 = arith.negf %52 : vector<8x48xf32>
    %54 = math.exp %53 : vector<8x48xf32>
    %cst_15 = arith.constant 1.000000e+00 : f32
    %55 = vector.broadcast %cst_15 : f32 to vector<8x48xf32>
    %56 = arith.addf %55, %54 : vector<8x48xf32>
    %57 = arith.divf %55, %56 : vector<8x48xf32>
    %58 = vector.extract_strided_slice %51 {offsets = [0, 48], sizes = [8, 16], strides = [1, 1]} : vector<8x64xf32> to vector<8x16xf32>
    %59 = math.tanh %58 : vector<8x16xf32>
    %60 = vector.extract_strided_slice %57 {offsets = [0, 0], sizes = [8, 16], strides = [1, 1]} : vector<8x48xf32> to vector<8x16xf32>
    %61 = vector.extract_strided_slice %57 {offsets = [0, 16], sizes = [8, 16], strides = [1, 1]} : vector<8x48xf32> to vector<8x16xf32>
    %62 = vector.extract_strided_slice %57 {offsets = [0, 32], sizes = [8, 16], strides = [1, 1]} : vector<8x48xf32> to vector<8x16xf32>
    %63 = arith.mulf %61, %46 : vector<8x16xf32>
    %64 = arith.mulf %60, %59 : vector<8x16xf32>
    %65 = arith.addf %63, %64 : vector<8x16xf32>
    %66 = math.tanh %65 : vector<8x16xf32>
    %67 = arith.mulf %62, %66 : vector<8x16xf32>
    %68 = vector.extract_strided_slice %8 {offsets = [24, 0], sizes = [8, 64], strides = [1, 1]} : vector<32x64xf32> to vector<8x64xf32>
    %cst_16 = arith.constant dense<0.000000e+00> : vector<8x64xf32>
    %69 = tpu.matmul %67, %1, %cst_16 {dimension_numbers = #tpu.dot_dimension_numbers<[1], [0], [0], [1], [0, 0, 1, 1], [], []>} : vector<8x16xf32>, vector<16x64xf32>, vector<8x64xf32> -> vector<8x64xf32>
    %70 = arith.addf %68, %69 : vector<8x64xf32>
    %71 = vector.extract_strided_slice %70 {offsets = [0, 0], sizes = [8, 48], strides = [1, 1]} : vector<8x64xf32> to vector<8x48xf32>
    %72 = arith.negf %71 : vector<8x48xf32>
    %73 = math.exp %72 : vector<8x48xf32>
    %cst_17 = arith.constant 1.000000e+00 : f32
    %74 = vector.broadcast %cst_17 : f32 to vector<8x48xf32>
    %75 = arith.addf %74, %73 : vector<8x48xf32>
    %76 = arith.divf %74, %75 : vector<8x48xf32>
    %77 = vector.extract_strided_slice %70 {offsets = [0, 48], sizes = [8, 16], strides = [1, 1]} : vector<8x64xf32> to vector<8x16xf32>
    %78 = math.tanh %77 : vector<8x16xf32>
    %79 = vector.extract_strided_slice %76 {offsets = [0, 0], sizes = [8, 16], strides = [1, 1]} : vector<8x48xf32> to vector<8x16xf32>
    %80 = vector.extract_strided_slice %76 {offsets = [0, 16], sizes = [8, 16], strides = [1, 1]} : vector<8x48xf32> to vector<8x16xf32>
    %81 = vector.extract_strided_slice %76 {offsets = [0, 32], sizes = [8, 16], strides = [1, 1]} : vector<8x48xf32> to vector<8x16xf32>
    %82 = arith.mulf %80, %65 : vector<8x16xf32>
    %83 = arith.mulf %79, %78 : vector<8x16xf32>
    %84 = arith.addf %82, %83 : vector<8x16xf32>
    %85 = math.tanh %84 : vector<8x16xf32>
    %86 = arith.mulf %81, %85 : vector<8x16xf32>
    %87 = tpu.concatenate %29, %48, %67, %86 in 1 : vector<8x16xf32>, vector<8x16xf32>, vector<8x16xf32>, vector<8x16xf32> -> vector<8x64xf32>
    %cst_18 = arith.constant dense<0.000000e+00> : vector<8x5xf32>
    %88 = tpu.matmul %87, %3, %cst_18 {dimension_numbers = #tpu.dot_dimension_numbers<[1], [0], [0], [1], [0, 0, 1, 1], [], []>} : vector<8x64xf32>, vector<64x5xf32>, vector<8x5xf32> -> vector<8x5xf32>
    %89 = vector.broadcast %4 : vector<1x5xf32> to vector<8x5xf32>
    %90 = arith.addf %88, %89 : vector<8x5xf32>
    %cst_19 = arith.constant dense<0xFF800000> : vector<8xf32>
    %91 = vector.multi_reduction <maximumf>, %90, %cst_19 [1] : vector<8x5xf32> to vector<8xf32>
    %92 = vector.shape_cast %91 : vector<8xf32> to vector<8x1xf32>
    %93 = vector.broadcast %92 : vector<8x1xf32> to vector<8x5xf32>
    %94 = arith.subf %90, %93 : vector<8x5xf32>
    %95 = math.exp %94 : vector<8x5xf32>
    %cst_20 = arith.constant dense<0.000000e+00> : vector<8xf32>
    %96 = vector.multi_reduction <add>, %95, %cst_20 [1] : vector<8x5xf32> to vector<8xf32>
    %97 = vector.shape_cast %96 : vector<8xf32> to vector<8x1xf32>
    %98 = vector.broadcast %97 : vector<8x1xf32> to vector<8x5xf32>
    %99 = arith.divf %95, %98 : vector<8x5xf32>
    %c0_21 = arith.constant 0 : index
    %c0_22 = arith.constant 0 : index
    %100 = vector.load %arg4[%c0_21, %c0_22] : memref<8x5xf32, #tpu.memory_space<vmem>>, vector<8x5xf32>
    tpu.vector_store %arg4[%c0_21, %c0_22], %99 {strides = array<i32>} : memref<8x5xf32, #tpu.memory_space<vmem>>, vector<8x5xf32>,
    return
  }
  func.func @transform_0(%arg0: i32) -> (i32, i32) {
    %c0_i32 = arith.constant 0 : i32
    %c0_i32_0 = arith.constant 0 : i32
    %c0_i32_1 = arith.constant 0 : i32
    return %c0_i32, %c0_i32_0 : i32, i32
  }
  func.func @transform_1(%arg0: i32) -> (i32, i32) {
    %c0_i32 = arith.constant 0 : i32
    %c0_i32_0 = arith.constant 0 : i32
    %c0_i32_1 = arith.constant 0 : i32
    return %c0_i32, %c0_i32_0 : i32, i32
  }
  func.func @transform_2(%arg0: i32) -> (i32, i32) {
    %c0_i32 = arith.constant 0 : i32
    %c0_i32_0 = arith.constant 0 : i32
    %c0_i32_1 = arith.constant 0 : i32
    return %c0_i32, %c0_i32_0 : i32, i32
  }
  func.func @transform_3(%arg0: i32) -> (i32, i32) {
    %c0_i32 = arith.constant 0 : i32
    %c0_i32_0 = arith.constant 0 : i32
    %c0_i32_1 = arith.constant 0 : i32
    return %c0_i32, %c0_i32_0 : i32, i32
  }
}

</mosaic_0001>

<llo_original>
// kernel: tpu_custom_call.1
$region0: #{tpu_custom_call.1}
  #allocation0 [shape = 'u32[]', space=smem, size = 0x4, offset = 0x4, fixed_abs, tag = 'smem constant byte address 0x4 - core index']
  #allocation1 [shape = 'u32[144,128]{1,0:T(1,128)}', space=vmem, size = 0x12000, scoped, tag = 'internal scratch']
  %s0 = inlined_call_operand.vmem [shape: f32[32,16], index: 0, kind: input, shape index: {}]
  %s1 = inlined_call_operand.vmem [shape: f32[33,64], index: 1, kind: input, shape index: {}]
  %s2 = inlined_call_operand.vmem [shape: f32[65,5], index: 2, kind: input, shape index: {}]
  %s3 = inlined_call_operand.hbm [shape: f32[8,5], index: 3, kind: output, shape index: {}]
  %s4 = sld [smem:[#allocation0]]
  $region22: #{tpu_custom_call.1} parent=0
    _
  %s6 = ssub.s32 1, %s4
  %s7 = scalar_select 0, %s6, %s4
  $region1: #{tpu_custom_call.1} parent=0
    #allocation2 [shape = 'u8[4096]{0}', space=vmem, size = 0x1000, scoped, tag = 'output window, operand 0, single buffered']
    #allocation3 [shape = 's32[1]{0}', space=sflag, size = 0x4, scoped, tag = 'scoped memory for tpu_custom_call.1']
    %8 = vsyncpa [#allocation3], 0
    // Predicated region
    $region2: #{tpu_custom_call.1} parent=1 // pred_check
      _
    $region3: #{tpu_custom_call.1} parent=1 // pred_check_branch
      %10 = sbr.rel (0) target = $region5
    $region4: #{tpu_custom_call.1} parent=1 // pred_region
      _
    $region5: #{tpu_custom_call.1} parent=1 // pred_fallthru
      _
    // Predicated region
    $region6: #{tpu_custom_call.1} parent=1 // pred_check
      _
    $region7: #{tpu_custom_call.1} parent=1 // pred_check_branch
      %12 = sbr.rel (0) target = $region9
    $region8: #{tpu_custom_call.1} parent=1 // pred_region
      _
    $region9: #{tpu_custom_call.1} parent=1 // pred_fallthru
      _
    // Predicated region
    $region10: #{tpu_custom_call.1} parent=1 // pred_check
      _
    $region11: #{tpu_custom_call.1} parent=1 // pred_check_branch
      %14 = sbr.rel (0) target = $region13
    $region12: #{tpu_custom_call.1} parent=1 // pred_region
      _
    $region13: #{tpu_custom_call.1} parent=1 // pred_fallthru
      _
    %v15 = vld [vmem:[%s1] sm:$0xff]
    %v16 = vld [vmem:[%s1 + $0x8] sm:$0xff]
    %v17 = vld [vmem:[%s1 + $0x10] sm:$0xff]
    %v18 = vld [vmem:[%s1 + $0x18] sm:$0xff]
    %v19 = vld [vmem:[%s1 + $0x20] sm:$0x1]
    %v20 = vld [vmem:[%s2] sm:$0xff]
    %v21 = vld [vmem:[%s2 + $0x8] sm:$0xff]
    %v22 = vld [vmem:[%s2 + $0x10] sm:$0xff]
    %v23 = vld [vmem:[%s2 + $0x18] sm:$0xff]
    %v24 = vld [vmem:[%s2 + $0x20] sm:$0xff]
    %v25 = vld [vmem:[%s2 + $0x28] sm:$0xff]
    %v26 = vld [vmem:[%s2 + $0x30] sm:$0xff]
    %v27 = vld [vmem:[%s2 + $0x38] sm:$0xff]
    %v28 = vld [vmem:[%s2 + $0x40] sm:$0x1]
    %v29 = vld [vmem:[%s0] sm:$0xff]
    %v30 = vld [vmem:[%s0 + $0x8] sm:$0xff]
    %v31 = vld [vmem:[%s0 + $0x10] sm:$0xff]
    %v32 = vld [vmem:[%s0 + $0x18] sm:$0xff]
    %v33 = vlaneseq
    %v34 = vshrl.u32 %v33, 7
    %v35 = vsub.s32 0, %v34
    %v36 = vrot.slane %v19, %v35
    %vm37 = vcmask 130048
    %v39 = vsel %vm37, %v29, 0
    %v42 = vsel %vm37, %v30, 0
    %v45 = vsel %vm37, %v31, 0
    %v48 = vsel %vm37, %v32, 0
    %50 = vmatprep.subr.mxu0 0.0
    %51 = vmatpush1.msra.mxu0 %v15
    %52 = vmatprep.subr.mxu0 0.0
    %53 = vmatpush1.msra.mxu0 %v16
    %54 = vmatprep.subr.mxu0 0.0
    %55 = vmatpush1.msra.mxu0 0.0
    %56 = vmatprep.subr.mxu0 0.0
    %57 = vmatpush1.msra.mxu0 0.0
    %58 = vmatprep.subr.mxu0 0.0
    %59 = vmatpush1.msra.mxu0 0.0
    %60 = vmatprep.subr.mxu0 0.0
    %61 = vmatpush1.msra.mxu0 0.0
    %62 = vmatprep.subr.mxu0 0.0
    %63 = vmatpush1.msra.mxu0 0.0
    %64 = vmatprep.subr.mxu0 0.0
    %65 = vmatpush1.msra.mxu0 0.0
    %66 = vmatprep.subr.mxu0 0.0
    %67 = vmatpush1.msra.mxu0 0.0
    %68 = vmatprep.subr.mxu0 0.0
    %69 = vmatpush1.msra.mxu0 0.0
    %70 = vmatprep.subr.mxu0 0.0
    %71 = vmatpush1.msra.mxu0 0.0
    %72 = vmatprep.subr.mxu0 0.0
    %73 = vmatpush1.msra.mxu0 0.0
    %74 = vmatprep.subr.mxu0 0.0
    %75 = vmatpush1.msra.mxu0 0.0
    %76 = vmatprep.subr.mxu0 0.0
    %77 = vmatpush1.msra.mxu0 0.0
    %78 = vmatprep.subr.mxu0 0.0
    %79 = vmatpush1.msra.mxu0 0.0
    %80 = vmatprep.subr.mxu0 0.0
    %81 = vmatpush1.msra.mxu0 0.0
    %82 = vmatprep.subr.mxu0 0.0
    %83 = vmatpush1.msra.mxu0 0.0
    %84 = vmatprep.subr.mxu0 0.0
    %85 = vmatpush1.msra.mxu0 0.0
    %86 = vmatprep.subr.mxu0 0.0
    %87 = vmatpush1.msra.mxu0 0.0
    %88 = vmatprep.subr.mxu0 0.0
    %89 = vmatpush1.msra.mxu0 0.0
    %90 = vmatprep.subr.mxu0 0.0
    %91 = vmatpush1.msra.mxu0 0.0
    %92 = vmatprep.subr.mxu0 0.0
    %93 = vmatpush1.msra.mxu0 0.0
    %94 = vmatprep.subr.mxu0 0.0
    %95 = vmatpush1.msra.mxu0 0.0
    %96 = vmatprep.subr.mxu0 0.0
    %97 = vmatpush1.msra.mxu0 0.0
    %98 = vmatprep.subr.mxu0 0.0
    %99 = vmatpush1.msra.mxu0 0.0
    %100 = vmatprep.subr.mxu0 0.0
    %101 = vmatpush1.msra.mxu0 0.0
    %102 = vmatprep.subr.mxu0 0.0
    %103 = vmatpush1.msra.mxu0 0.0
    %104 = vmatprep.subr.mxu0 0.0
    %105 = vmatpush1.msra.mxu0 0.0
    %106 = vmatprep.subr.mxu0 0.0
    %107 = vmatpush1.msra.mxu0 0.0
    %108 = vmatprep.subr.mxu0 0.0
    %109 = vmatpush1.msra.mxu0 0.0
    %110 = vmatprep.subr.mxu0 0.0
    %111 = vmatpush1.msra.mxu0 0.0
    %112 = vmatprep.subr.mxu0 0.0
    %113 = vmatpush1.msra.mxu0 0.0
    %114 = vmatprep.mubr.f32.mxu0 0.0
    %115 = vmatmul.mubr.f32.gmra.mrb[0].mxu0 %v39
    %v116 = vpop.f32.mrb[0].mxu0
    %v117 = vadd.f32 %v36, %v116
    %v118 = vpop.f32.mrb[0].mxu0
    %119 = vmatprep.mubr.f32.mxu0 0.0
    %120 = vmatmul.mubr.f32.gmra.mrb[0].mxu0 %v42
    %v121 = vpop.f32.mrb[0].mxu0
    %v122 = vadd.f32 %v36, %v121
    %v123 = vpop.f32.mrb[0].mxu0
    %124 = vmatprep.mubr.f32.mxu0 0.0
    %125 = vmatmul.mubr.f32.gmra.mrb[0].mxu0 %v45
    %v126 = vpop.f32.mrb[0].mxu0
    %v127 = vadd.f32 %v36, %v126
    %v128 = vpop.f32.mrb[0].mxu0
    %129 = vmatprep.mubr.f32.mxu0 0.0
    %130 = vmatmul.mubr.f32.gmra.mrb[0].mxu0 %v48
    %v131 = vpop.f32.mrb[0].mxu0
    %v132 = vadd.f32 %v36, %v131
    %v133 = vpop.f32.mrb[0].mxu0
    %134 = vdwg.mxu0
    %v136 = vsel %vm37, 0.0, 0
    %138 = vmatprep.subr.mxu0 0.0
    %139 = vmatpush1.msra.mxu0 %v17
    %140 = vmatprep.subr.mxu0 0.0
    %141 = vmatpush1.msra.mxu0 %v18
    %142 = vmatprep.subr.mxu0 0.0
    %143 = vmatpush1.msra.mxu0 0.0
    %144 = vmatprep.subr.mxu0 0.0
    %145 = vmatpush1.msra.mxu0 0.0
    %146 = vmatprep.subr.mxu0 0.0
    %147 = vmatpush1.msra.mxu0 0.0
    %148 = vmatprep.subr.mxu0 0.0
    %149 = vmatpush1.msra.mxu0 0.0
    %150 = vmatprep.subr.mxu0 0.0
    %151 = vmatpush1.msra.mxu0 0.0
    %152 = vmatprep.subr.mxu0 0.0
    %153 = vmatpush1.msra.mxu0 0.0
    %154 = vmatprep.subr.mxu0 0.0
    %155 = vmatpush1.msra.mxu0 0.0
    %156 = vmatprep.subr.mxu0 0.0
    %157 = vmatpush1.msra.mxu0 0.0
    %158 = vmatprep.subr.mxu0 0.0
    %159 = vmatpush1.msra.mxu0 0.0
    %160 = vmatprep.subr.mxu0 0.0
    %161 = vmatpush1.msra.mxu0 0.0
    %162 = vmatprep.subr.mxu0 0.0
    %163 = vmatpush1.msra.mxu0 0.0
    %164 = vmatprep.subr.mxu0 0.0
    %165 = vmatpush1.msra.mxu0 0.0
    %166 = vmatprep.subr.mxu0 0.0
    %167 = vmatpush1.msra.mxu0 0.0
    %168 = vmatprep.subr.mxu0 0.0
    %169 = vmatpush1.msra.mxu0 0.0
    %170 = vmatprep.subr.mxu0 0.0
    %171 = vmatpush1.msra.mxu0 0.0
    %172 = vmatprep.subr.mxu0 0.0
    %173 = vmatpush1.msra.mxu0 0.0
    %174 = vmatprep.subr.mxu0 0.0
    %175 = vmatpush1.msra.mxu0 0.0
    %176 = vmatprep.subr.mxu0 0.0
    %177 = vmatpush1.msra.mxu0 0.0
    %178 = vmatprep.subr.mxu0 0.0
    %179 = vmatpush1.msra.mxu0 0.0
    %180 = vmatprep.subr.mxu0 0.0
    %181 = vmatpush1.msra.mxu0 0.0
    %182 = vmatprep.subr.mxu0 0.0
    %183 = vmatpush1.msra.mxu0 0.0
    %184 = vmatprep.subr.mxu0 0.0
    %185 = vmatpush1.msra.mxu0 0.0
    %186 = vmatprep.subr.mxu0 0.0
    %187 = vmatpush1.msra.mxu0 0.0
    %188 = vmatprep.subr.mxu0 0.0
    %189 = vmatpush1.msra.mxu0 0.0
    %190 = vmatprep.subr.mxu0 0.0
    %191 = vmatpush1.msra.mxu0 0.0
    %192 = vmatprep.subr.mxu0 0.0
    %193 = vmatpush1.msra.mxu0 0.0
    %194 = vmatprep.subr.mxu0 0.0
    %195 = vmatpush1.msra.mxu0 0.0
    %196 = vmatprep.subr.mxu0 0.0
    %197 = vmatpush1.msra.mxu0 0.0
    %198 = vmatprep.subr.mxu0 0.0
    %199 = vmatpush1.msra.mxu0 0.0
    %200 = vmatprep.subr.mxu0 0.0
    %201 = vmatpush1.msra.mxu0 0.0
    %202 = vmatprep.mubr.f32.mxu0 0.0
    %203 = vmatmul.mubr.f32.gmra.mrb[0].mxu0 %v136
    %v204 = vpop.f32.mrb[0].mxu0
    %v205 = vadd.f32 0.0, %v204
    %v206 = vpop.f32.mrb[0].mxu0
    %207 = vdwg.mxu0
    %v208 = vadd.f32 %v117, %v205
    %v209 = vxor.u32 %v208, 2147483648
    %v210 = vmul.f32 %v209, 1.442695
    %v211 = vpow.pop %v210
    %v212 = vadd.f32 %v211, 1.0
    %v213 = vrcp.pop %v212
    %v214 = vmul.f32 1.0, %v213
    %v215 = vtanh.pop %v208
    %v216 = vmul.f32 %v214, 0.0
    %218 = vrot.lane.b32.xlu0 %v215, 80
    %v219 = vpop.permute.xlu0 %218
    %v221 = vmul.f32 %v214, %v219
    %223 = vrot.lane.b32.xlu0 %v221, 16
    %v224 = vpop.permute.xlu0 %223
    %v226 = vadd.f32 %v216, %v224
    %v227 = vtanh.pop %v226
    %229 = vrot.lane.b32.xlu0 %v227, 16
    %v230 = vpop.permute.xlu0 %229
    %v232 = vmul.f32 %v214, %v230
    %234 = vrot.lane.b32.xlu0 %v232, 96
    %v235 = vpop.permute.xlu0 %234
    %v236 = vsel %vm37, %v235, 0
    %238 = vmatprep.subr.mxu0 0.0
    %239 = vmatpush1.msra.mxu0 %v17
    %240 = vmatprep.subr.mxu0 0.0
    %241 = vmatpush1.msra.mxu0 %v18
    %242 = vmatprep.subr.mxu0 0.0
    %243 = vmatpush1.msra.mxu0 0.0
    %244 = vmatprep.subr.mxu0 0.0
    %245 = vmatpush1.msra.mxu0 0.0
    %246 = vmatprep.subr.mxu0 0.0
    %247 = vmatpush1.msra.mxu0 0.0
    %248 = vmatprep.subr.mxu0 0.0
    %249 = vmatpush1.msra.mxu0 0.0
    %250 = vmatprep.subr.mxu0 0.0
    %251 = vmatpush1.msra.mxu0 0.0
    %252 = vmatprep.subr.mxu0 0.0
    %253 = vmatpush1.msra.mxu0 0.0
    %254 = vmatprep.subr.mxu0 0.0
    %255 = vmatpush1.msra.mxu0 0.0
    %256 = vmatprep.subr.mxu0 0.0
    %257 = vmatpush1.msra.mxu0 0.0
    %258 = vmatprep.subr.mxu0 0.0
    %259 = vmatpush1.msra.mxu0 0.0
    %260 = vmatprep.subr.mxu0 0.0
    %261 = vmatpush1.msra.mxu0 0.0
    %262 = vmatprep.subr.mxu0 0.0
    %263 = vmatpush1.msra.mxu0 0.0
    %264 = vmatprep.subr.mxu0 0.0
    %265 = vmatpush1.msra.mxu0 0.0
    %266 = vmatprep.subr.mxu0 0.0
    %267 = vmatpush1.msra.mxu0 0.0
    %268 = vmatprep.subr.mxu0 0.0
    %269 = vmatpush1.msra.mxu0 0.0
    %270 = vmatprep.subr.mxu0 0.0
    %271 = vmatpush1.msra.mxu0 0.0
    %272 = vmatprep.subr.mxu0 0.0
    %273 = vmatpush1.msra.mxu0 0.0
    %274 = vmatprep.subr.mxu0 0.0
    %275 = vmatpush1.msra.mxu0 0.0
    %276 = vmatprep.subr.mxu0 0.0
    %277 = vmatpush1.msra.mxu0 0.0
    %278 = vmatprep.subr.mxu0 0.0
    %279 = vmatpush1.msra.mxu0 0.0
    %280 = vmatprep.subr.mxu0 0.0
    %281 = vmatpush1.msra.mxu0 0.0
    %282 = vmatprep.subr.mxu0 0.0
    %283 = vmatpush1.msra.mxu0 0.0
    %284 = vmatprep.subr.mxu0 0.0
    %285 = vmatpush1.msra.mxu0 0.0
    %286 = vmatprep.subr.mxu0 0.0
    %287 = vmatpush1.msra.mxu0 0.0
    %288 = vmatprep.subr.mxu0 0.0
    %289 = vmatpush1.msra.mxu0 0.0
    %290 = vmatprep.subr.mxu0 0.0
    %291 = vmatpush1.msra.mxu0 0.0
    %292 = vmatprep.subr.mxu0 0.0
    %293 = vmatpush1.msra.mxu0 0.0
    %294 = vmatprep.subr.mxu0 0.0
    %295 = vmatpush1.msra.mxu0 0.0
    %296 = vmatprep.subr.mxu0 0.0
    %297 = vmatpush1.msra.mxu0 0.0
    %298 = vmatprep.subr.mxu0 0.0
    %299 = vmatpush1.msra.mxu0 0.0
    %300 = vmatprep.subr.mxu0 0.0
    %301 = vmatpush1.msra.mxu0 0.0
    %302 = vmatprep.mubr.f32.mxu0 0.0
    %303 = vmatmul.mubr.f32.gmra.mrb[0].mxu0 %v236
    %v304 = vpop.f32.mrb[0].mxu0
    %v305 = vadd.f32 0.0, %v304
    %v306 = vpop.f32.mrb[0].mxu0
    %307 = vdwg.mxu0
    %v308 = vadd.f32 %v122, %v305
    %v309 = vxor.u32 %v308, 2147483648
    %v310 = vmul.f32 %v309, 1.442695
    %v311 = vpow.pop %v310
    %v312 = vadd.f32 %v311, 1.0
    %v313 = vrcp.pop %v312
    %v314 = vmul.f32 1.0, %v313
    %v315 = vtanh.pop %v308
    %v316 = vmul.f32 %v314, %v226
    %318 = vrot.lane.b32.xlu0 %v315, 80
    %v319 = vpop.permute.xlu0 %318
    %v321 = vmul.f32 %v314, %v319
    %323 = vrot.lane.b32.xlu0 %v321, 16
    %v324 = vpop.permute.xlu0 %323
    %v326 = vadd.f32 %v316, %v324
    %v327 = vtanh.pop %v326
    %329 = vrot.lane.b32.xlu0 %v327, 16
    %v330 = vpop.permute.xlu0 %329
    %v332 = vmul.f32 %v314, %v330
    %334 = vrot.lane.b32.xlu0 %v332, 96
    %v335 = vpop.permute.xlu0 %334
    %v336 = vsel %vm37, %v335, 0
    %338 = vmatprep.subr.mxu0 0.0
    %339 = vmatpush1.msra.mxu0 %v17
    %340 = vmatprep.subr.mxu0 0.0
    %341 = vmatpush1.msra.mxu0 %v18
    %342 = vmatprep.subr.mxu0 0.0
    %343 = vmatpush1.msra.mxu0 0.0
    %344 = vmatprep.subr.mxu0 0.0
    %345 = vmatpush1.msra.mxu0 0.0
    %346 = vmatprep.subr.mxu0 0.0
    %347 = vmatpush1.msra.mxu0 0.0
    %348 = vmatprep.subr.mxu0 0.0
    %349 = vmatpush1.msra.mxu0 0.0
    %350 = vmatprep.subr.mxu0 0.0
    %351 = vmatpush1.msra.mxu0 0.0
    %352 = vmatprep.subr.mxu0 0.0
    %353 = vmatpush1.msra.mxu0 0.0
    %354 = vmatprep.subr.mxu0 0.0
    %355 = vmatpush1.msra.mxu0 0.0
    %356 = vmatprep.subr.mxu0 0.0
    %357 = vmatpush1.msra.mxu0 0.0
    %358 = vmatprep.subr.mxu0 0.0
    %359 = vmatpush1.msra.mxu0 0.0
    %360 = vmatprep.subr.mxu0 0.0
    %361 = vmatpush1.msra.mxu0 0.0
    %362 = vmatprep.subr.mxu0 0.0
    %363 = vmatpush1.msra.mxu0 0.0
    %364 = vmatprep.subr.mxu0 0.0
    %365 = vmatpush1.msra.mxu0 0.0
    %366 = vmatprep.subr.mxu0 0.0
    %367 = vmatpush1.msra.mxu0 0.0
    %368 = vmatprep.subr.mxu0 0.0
    %369 = vmatpush1.msra.mxu0 0.0
    %370 = vmatprep.subr.mxu0 0.0
    %371 = vmatpush1.msra.mxu0 0.0
    %372 = vmatprep.subr.mxu0 0.0
    %373 = vmatpush1.msra.mxu0 0.0
    %374 = vmatprep.subr.mxu0 0.0
    %375 = vmatpush1.msra.mxu0 0.0
    %376 = vmatprep.subr.mxu0 0.0
    %377 = vmatpush1.msra.mxu0 0.0
    %378 = vmatprep.subr.mxu0 0.0
    %379 = vmatpush1.msra.mxu0 0.0
    %380 = vmatprep.subr.mxu0 0.0
    %381 = vmatpush1.msra.mxu0 0.0
    %382 = vmatprep.subr.mxu0 0.0
    %383 = vmatpush1.msra.mxu0 0.0
    %384 = vmatprep.subr.mxu0 0.0
    %385 = vmatpush1.msra.mxu0 0.0
    %386 = vmatprep.subr.mxu0 0.0
    %387 = vmatpush1.msra.mxu0 0.0
    %388 = vmatprep.subr.mxu0 0.0
    %389 = vmatpush1.msra.mxu0 0.0
    %390 = vmatprep.subr.mxu0 0.0
    %391 = vmatpush1.msra.mxu0 0.0
    %392 = vmatprep.subr.mxu0 0.0
    %393 = vmatpush1.msra.mxu0 0.0
    %394 = vmatprep.subr.mxu0 0.0
    %395 = vmatpush1.msra.mxu0 0.0
    %396 = vmatprep.subr.mxu0 0.0
    %397 = vmatpush1.msra.mxu0 0.0
    %398 = vmatprep.subr.mxu0 0.0
    %399 = vmatpush1.msra.mxu0 0.0
    %400 = vmatprep.subr.mxu0 0.0
    %401 = vmatpush1.msra.mxu0 0.0
    %402 = vmatprep.mubr.f32.mxu0 0.0
    %403 = vmatmul.mubr.f32.gmra.mrb[0].mxu0 %v336
    %v404 = vpop.f32.mrb[0].mxu0
    %v405 = vadd.f32 0.0, %v404
    %v406 = vpop.f32.mrb[0].mxu0
    %407 = vdwg.mxu0
    %v408 = vadd.f32 %v127, %v405
    %v409 = vxor.u32 %v408, 2147483648
    %v410 = vmul.f32 %v409, 1.442695
    %v411 = vpow.pop %v410
    %v412 = vadd.f32 %v411, 1.0
    %v413 = vrcp.pop %v412
    %v414 = vmul.f32 1.0, %v413
    %v415 = vtanh.pop %v408
    %v416 = vmul.f32 %v414, %v326
    %418 = vrot.lane.b32.xlu0 %v415, 80
    %v419 = vpop.permute.xlu0 %418
    %v421 = vmul.f32 %v414, %v419
    %423 = vrot.lane.b32.xlu0 %v421, 16
    %v424 = vpop.permute.xlu0 %423
    %v426 = vadd.f32 %v416, %v424
    %v427 = vtanh.pop %v426
    %429 = vrot.lane.b32.xlu0 %v427, 16
    %v430 = vpop.permute.xlu0 %429
    %v432 = vmul.f32 %v414, %v430
    %434 = vrot.lane.b32.xlu0 %v432, 96
    %v435 = vpop.permute.xlu0 %434
    %v436 = vsel %vm37, %v435, 0
    %438 = vmatprep.subr.mxu0 0.0
    %439 = vmatpush1.msra.mxu0 %v17
    %440 = vmatprep.subr.mxu0 0.0
    %441 = vmatpush1.msra.mxu0 %v18
    %442 = vmatprep.subr.mxu0 0.0
    %443 = vmatpush1.msra.mxu0 0.0
    %444 = vmatprep.subr.mxu0 0.0
    %445 = vmatpush1.msra.mxu0 0.0
    %446 = vmatprep.subr.mxu0 0.0
    %447 = vmatpush1.msra.mxu0 0.0
    %448 = vmatprep.subr.mxu0 0.0
    %449 = vmatpush1.msra.mxu0 0.0
    %450 = vmatprep.subr.mxu0 0.0
    %451 = vmatpush1.msra.mxu0 0.0
    %452 = vmatprep.subr.mxu0 0.0
    %453 = vmatpush1.msra.mxu0 0.0
    %454 = vmatprep.subr.mxu0 0.0
    %455 = vmatpush1.msra.mxu0 0.0
    %456 = vmatprep.subr.mxu0 0.0
    %457 = vmatpush1.msra.mxu0 0.0
    %458 = vmatprep.subr.mxu0 0.0
    %459 = vmatpush1.msra.mxu0 0.0
    %460 = vmatprep.subr.mxu0 0.0
    %461 = vmatpush1.msra.mxu0 0.0
    %462 = vmatprep.subr.mxu0 0.0
    %463 = vmatpush1.msra.mxu0 0.0
    %464 = vmatprep.subr.mxu0 0.0
    %465 = vmatpush1.msra.mxu0 0.0
    %466 = vmatprep.subr.mxu0 0.0
    %467 = vmatpush1.msra.mxu0 0.0
    %468 = vmatprep.subr.mxu0 0.0
    %469 = vmatpush1.msra.mxu0 0.0
    %470 = vmatprep.subr.mxu0 0.0
    %471 = vmatpush1.msra.mxu0 0.0
    %472 = vmatprep.subr.mxu0 0.0
    %473 = vmatpush1.msra.mxu0 0.0
    %474 = vmatprep.subr.mxu0 0.0
    %475 = vmatpush1.msra.mxu0 0.0
    %476 = vmatprep.subr.mxu0 0.0
    %477 = vmatpush1.msra.mxu0 0.0
    %478 = vmatprep.subr.mxu0 0.0
    %479 = vmatpush1.msra.mxu0 0.0
    %480 = vmatprep.subr.mxu0 0.0
    %481 = vmatpush1.msra.mxu0 0.0
    %482 = vmatprep.subr.mxu0 0.0
    %483 = vmatpush1.msra.mxu0 0.0
    %484 = vmatprep.subr.mxu0 0.0
    %485 = vmatpush1.msra.mxu0 0.0
    %486 = vmatprep.subr.mxu0 0.0
    %487 = vmatpush1.msra.mxu0 0.0
    %488 = vmatprep.subr.mxu0 0.0
    %489 = vmatpush1.msra.mxu0 0.0
    %490 = vmatprep.subr.mxu0 0.0
    %491 = vmatpush1.msra.mxu0 0.0
    %492 = vmatprep.subr.mxu0 0.0
    %493 = vmatpush1.msra.mxu0 0.0
    %494 = vmatprep.subr.mxu0 0.0
    %495 = vmatpush1.msra.mxu0 0.0
    %496 = vmatprep.subr.mxu0 0.0
    %497 = vmatpush1.msra.mxu0 0.0
    %498 = vmatprep.subr.mxu0 0.0
    %499 = vmatpush1.msra.mxu0 0.0
    %500 = vmatprep.subr.mxu0 0.0
    %501 = vmatpush1.msra.mxu0 0.0
    %502 = vmatprep.mubr.f32.mxu0 0.0
    %503 = vmatmul.mubr.f32.gmra.mrb[0].mxu0 %v436
    %v504 = vpop.f32.mrb[0].mxu0
    %v505 = vadd.f32 0.0, %v504
    %v506 = vpop.f32.mrb[0].mxu0
    %507 = vdwg.mxu0
    %v508 = vadd.f32 %v132, %v505
    %v509 = vxor.u32 %v508, 2147483648
    %v510 = vmul.f32 %v509, 1.442695
    %v511 = vpow.pop %v510
    %v512 = vadd.f32 %v511, 1.0
    %v513 = vrcp.pop %v512
    %v514 = vmul.f32 1.0, %v513
    %v515 = vtanh.pop %v508
    %v516 = vmul.f32 %v514, %v426
    %518 = vrot.lane.b32.xlu0 %v515, 80
    %v519 = vpop.permute.xlu0 %518
    %v521 = vmul.f32 %v514, %v519
    %523 = vrot.lane.b32.xlu0 %v521, 16
    %v524 = vpop.permute.xlu0 %523
    %v526 = vadd.f32 %v516, %v524
    %v527 = vtanh.pop %v526
    %529 = vrot.lane.b32.xlu0 %v527, 16
    %v530 = vpop.permute.xlu0 %529
    %v532 = vmul.f32 %v514, %v530
    %534 = vrot.lane.b32.xlu0 %v332, 112
    %v535 = vpop.permute.xlu0 %534
    %538 = vrot.lane.b32.xlu0 %v532, 16
    %v539 = vpop.permute.xlu0 %538
    %v541 = vsel %vm37, %v235, %v535
    %vm542 = vcmask 261120
    %v543 = vsel %vm542, %v541, %v432
    %vm544 = vcmask 392192
    %v545 = vsel %vm544, %v543, %v539
    %v546 = vlaneseq
    %v547 = vshrl.u32 %v546, 7
    %v548 = vsub.s32 0, %v547
    %v549 = vrot.slane %v28, %v548
    %vm550 = vcmask 523264
    %v552 = vsel %vm550, %v545, 0
    %554 = vmatprep.subr.mxu0 0.0
    %555 = vmatpush1.msra.mxu0 %v20
    %556 = vmatprep.subr.mxu0 0.0
    %557 = vmatpush1.msra.mxu0 %v21
    %558 = vmatprep.subr.mxu0 0.0
    %559 = vmatpush1.msra.mxu0 %v22
    %560 = vmatprep.subr.mxu0 0.0
    %561 = vmatpush1.msra.mxu0 %v23
    %562 = vmatprep.subr.mxu0 0.0
    %563 = vmatpush1.msra.mxu0 %v24
    %564 = vmatprep.subr.mxu0 0.0
    %565 = vmatpush1.msra.mxu0 %v25
    %566 = vmatprep.subr.mxu0 0.0
    %567 = vmatpush1.msra.mxu0 %v26
    %568 = vmatprep.subr.mxu0 0.0
    %569 = vmatpush1.msra.mxu0 %v27
    %570 = vmatprep.subr.mxu0 0.0
    %571 = vmatpush1.msra.mxu0 0.0
    %572 = vmatprep.subr.mxu0 0.0
    %573 = vmatpush1.msra.mxu0 0.0
    %574 = vmatprep.subr.mxu0 0.0
    %575 = vmatpush1.msra.mxu0 0.0
    %576 = vmatprep.subr.mxu0 0.0
    %577 = vmatpush1.msra.mxu0 0.0
    %578 = vmatprep.subr.mxu0 0.0
    %579 = vmatpush1.msra.mxu0 0.0
    %580 = vmatprep.subr.mxu0 0.0
    %581 = vmatpush1.msra.mxu0 0.0
    %582 = vmatprep.subr.mxu0 0.0
    %583 = vmatpush1.msra.mxu0 0.0
    %584 = vmatprep.subr.mxu0 0.0
    %585 = vmatpush1.msra.mxu0 0.0
    %586 = vmatprep.subr.mxu0 0.0
    %587 = vmatpush1.msra.mxu0 0.0
    %588 = vmatprep.subr.mxu0 0.0
    %589 = vmatpush1.msra.mxu0 0.0
    %590 = vmatprep.subr.mxu0 0.0
    %591 = vmatpush1.msra.mxu0 0.0
    %592 = vmatprep.subr.mxu0 0.0
    %593 = vmatpush1.msra.mxu0 0.0
    %594 = vmatprep.subr.mxu0 0.0
    %595 = vmatpush1.msra.mxu0 0.0
    %596 = vmatprep.subr.mxu0 0.0
    %597 = vmatpush1.msra.mxu0 0.0
    %598 = vmatprep.subr.mxu0 0.0
    %599 = vmatpush1.msra.mxu0 0.0
    %600 = vmatprep.subr.mxu0 0.0
    %601 = vmatpush1.msra.mxu0 0.0
    %602 = vmatprep.subr.mxu0 0.0
    %603 = vmatpush1.msra.mxu0 0.0
    %604 = vmatprep.subr.mxu0 0.0
    %605 = vmatpush1.msra.mxu0 0.0
    %606 = vmatprep.subr.mxu0 0.0
    %607 = vmatpush1.msra.mxu0 0.0
    %608 = vmatprep.subr.mxu0 0.0
    %609 = vmatpush1.msra.mxu0 0.0
    %610 = vmatprep.subr.mxu0 0.0
    %611 = vmatpush1.msra.mxu0 0.0
    %612 = vmatprep.subr.mxu0 0.0
    %613 = vmatpush1.msra.mxu0 0.0
    %614 = vmatprep.subr.mxu0 0.0
    %615 = vmatpush1.msra.mxu0 0.0
    %616 = vmatprep.subr.mxu0 0.0
    %617 = vmatpush1.msra.mxu0 0.0
    %618 = vmatprep.mubr.f32.mxu0 0.0
    %619 = vmatmul.mubr.f32.gmra.mrb[0].mxu0 %v552
    %v620 = vpop.f32.mrb[0].mxu0
    %v621 = vadd.f32 %v549, %v620
    %v622 = vpop.f32.mrb[0].mxu0
    %623 = vdwg.mxu0
    %vm624 = vcmask 39936
    %v625 = vsel %vm624, %v621, -inf
    %626 = vmax.xlane.f32.xlu0 %v625
    %v627 = vpop.xlane.xlu0 %626
    %v628 = vsub.f32 %v621, %v627
    %v629 = vmul.f32 %v628, 1.442695
    %v630 = vpow.pop %v629
    %v631 = vsel %vm624, %v630, 0.0
    %632 = vadd.xlane.f32.xlu0 %v631
    %v633 = vpop.xlane.xlu0 %632
    %v634 = vrcp.pop %v633
    %v635 = vmul.f32 %v630, %v634
    %636 = vst.msk [vmem:[#allocation2] sm:$0xff] %vm624, %v635
    // Predicated region
    $region14: #{tpu_custom_call.1} parent=1 // pred_check
      _
    $region15: #{tpu_custom_call.1} parent=1 // pred_check_branch
      %638 = sbr.rel (0) target = $region17
    $region16: #{tpu_custom_call.1} parent=1 // pred_region
      %s640 = ssub.s32 128, 128
      %641 = vsyncadd [#allocation3], %s640
      %s643 = sshll.u32 [#allocation2], 4
      %s644 = int_to_ptr.vmem [resolvable:$true] %s643
      %646 = dma.vmem_to_hbm [thread:$0]  %s644, 128, %s3, [#allocation3]
    $region17: #{tpu_custom_call.1} parent=1 // pred_fallthru
      _
    // Predicated region
    $region18: #{tpu_custom_call.1} parent=1 // pred_check
      _
    $region19: #{tpu_custom_call.1} parent=1 // pred_check_branch
      %648 = sbr.rel (0) target = $region21
    $region20: #{tpu_custom_call.1} parent=1 // pred_region
      %649 = dma.done [#allocation3], 128
    $region21: #{tpu_custom_call.1} parent=1 // pred_fallthru
      _
    %650 = vsyncpa [#allocation3], 1

</llo_original>
